<compile_context>
chip_gen: v7x
topology: tpu7x:2x2x1
jax: 0.10.0
libtpu: 0.0.40
codegen_flags: <defaults>
</compile_context>

<pallas_src>
import functools

import jax
import jax.numpy as jnp
from jax.experimental import pallas as pl
from jax.experimental.pallas import tpu as pltpu


def _graph_pool_kernel(tm, idx_ref, x_ref, out_ref):
    """Produce TM pooled rows per grid step.

    out[:, r, :] = 0.5 * (X[:, idx[2*m], :] + X[:, idx[2*m+1], :]),
    with m = t*TM + r, X the full (B, N, F) slab resident in VMEM and idx the
    flattened (2*M_pad,) edge table in SMEM (scalar prefetch).
    """
    t = pl.program_id(0)
    base = t * tm
    for r in range(tm):                      # static unroll over the row tile
        m = base + r
        i = idx_ref[2 * m]
        j = idx_ref[2 * m + 1]
        a = x_ref[:, pl.ds(i, 1), :]         # (B, 1, F) dynamic sublane gather
        b = x_ref[:, pl.ds(j, 1), :]
        out_ref[:, pl.ds(r, 1), :] = ((a + b) * 0.5).astype(out_ref.dtype)


def graph_pooling(inputs, pool_idx, *, tm=16):
    """inputs: (B, N, F) float; pool_idx: (M, 2) int -> (B, N+M, F)."""
    B, N, F = inputs.shape
    M = pool_idx.shape[0]

    # Flatten the edge table to 1-D for SMEM and pad M up to a multiple of the
    # per-step tile; padded entries pool vertex 0 with itself and are sliced
    # off below.
    m_pad = pl.cdiv(M, tm) * tm
    idx_flat = jnp.zeros((2 * m_pad,), jnp.int32).at[: 2 * M].set(
        pool_idx.astype(jnp.int32).reshape(-1))

    # VMEM budget: resident X (conservatively assume double-buffered by the
    # pipeliner) + output tile double buffer + slack; clamp below v7x's 64 MiB.
    itemsize = jnp.dtype(inputs.dtype).itemsize
    x_bytes = B * N * F * itemsize
    out_blk_bytes = B * tm * F * itemsize
    vmem_limit = min(max(2 * x_bytes + 2 * out_blk_bytes + (2 << 20),
                         8 * 1024 * 1024),
                     48 * 1024 * 1024)
    # TODO(synk): for X slabs that do not fit VMEM, switch x to
    # memory_space=pl.ANY with per-row make_async_copy gathers.

    pooled = pl.pallas_call(
        functools.partial(_graph_pool_kernel, tm),
        out_shape=jax.ShapeDtypeStruct((B, m_pad, F), inputs.dtype),
        grid_spec=pltpu.PrefetchScalarGridSpec(
            num_scalar_prefetch=1,                 # idx_flat lands in SMEM
            grid=(m_pad // tm,),                   # TM pooled rows per step
            in_specs=[
                # Full X slab, block index constant -> DMA'd once, resident.
                pl.BlockSpec((B, N, F), lambda t, idx_ref: (0, 0, 0)),
            ],
            out_specs=pl.BlockSpec((B, tm, F), lambda t, idx_ref: (0, t, 0)),
        ),
        compiler_params=pltpu.CompilerParams(
            dimension_semantics=("parallel",),
            vmem_limit_bytes=vmem_limit,
        ),
    )(idx_flat, inputs)

    # Only the M valid pooled rows; the N-row copy half of the concat is a
    # pure memcpy left to XLA.
    add_feat = pooled[:, :M, :]                               # (B, M, F)
    return jnp.concatenate([inputs, add_feat], axis=1)        # (B, N+M, F)


if __name__ == "__main__":
    key = jax.random.PRNGKey(0)
    k_x, k_idx = jax.random.split(key)

    # Small shapes consistent with the module: batch=2, N=16 vertices,
    # F=128 features (lane-dense last dim), M=24 pooled (new) vertices, each
    # defined by an edge between two existing vertices.
    B, N, F, M = 2, 16, 128, 24
    inputs = jax.random.normal(k_x, (B, N, F), dtype=jnp.float32)
    # Deterministic synthetic ellipse['pool_idx'][pool_id-1]: (M, 2) vertex ids.
    pool_idx = jax.random.randint(k_idx, (M, 2), 0, N, dtype=jnp.int32)

    out = graph_pooling(inputs, pool_idx)
    out = jax.block_until_ready(out)

    # Pure-JAX reference of the PyTorch forward.
    add_feat = 0.5 * inputs[:, pool_idx].sum(axis=2)          # (B, M, F)
    ref = jnp.concatenate([inputs, add_feat], axis=1)         # (B, N+M, F)

    assert out.shape == (B, N + M, F), out.shape
    assert out.dtype == inputs.dtype
    assert jnp.allclose(out, ref, atol=1e-6), float(jnp.abs(out - ref).max())
    print("KERNEL_OK")
</pallas_src>

<mosaic_0001>
module attributes {stable_mosaic.version = 11 : i64} {
  func.func @_graph_pool_kernel(%arg0: i32, %arg1: memref<64xi32, #tpu.memory_space<smem>>, %arg2: memref<2x16x128xf32, #tpu.memory_space<vmem>>, %arg3: memref<2x16x128xf32, #tpu.memory_space<vmem>>) attributes {dimension_semantics = [#tpu.dimension_semantics<parallel>], iteration_bounds = array<i64: 2>, scalar_prefetch = 1 : i64, scratch_operands = 0 : i64, tpu.core_type = #tpu.core_type<tc>, window_params = [{pipeline_mode = #tpu.pipeline_mode<synchronous>, transform_indices = @transform_0, window_bounds = array<i64: 2, 16, 128>}, {transform_indices = @transform_1, window_bounds = array<i64: 2, 16, 128>}]} {
    %c16_i32 = arith.constant 16 : i32
    %0 = arith.muli %arg0, %c16_i32 : i32
    %c0_i32 = arith.constant 0 : i32
    %1 = arith.addi %0, %c0_i32 : i32
    %c2_i32 = arith.constant 2 : i32
    %2 = arith.muli %c2_i32, %1 : i32
    %3 = arith.index_cast %2 : i32 to index
    %4 = memref.load %arg1[%3] : memref<64xi32, #tpu.memory_space<smem>>
    %c2_i32_0 = arith.constant 2 : i32
    %5 = arith.muli %c2_i32_0, %1 : i32
    %c1_i32 = arith.constant 1 : i32
    %6 = arith.addi %5, %c1_i32 : i32
    %7 = arith.index_cast %6 : i32 to index
    %8 = memref.load %arg1[%7] : memref<64xi32, #tpu.memory_space<smem>>
    %c0 = arith.constant 0 : index
    %9 = arith.index_cast %4 : i32 to index
    %c0_1 = arith.constant 0 : index
    %10 = vector.load %arg2[%c0, %9, %c0_1] : memref<2x16x128xf32, #tpu.memory_space<vmem>>, vector<2x1x128xf32>
    %c0_2 = arith.constant 0 : index
    %11 = arith.index_cast %8 : i32 to index
    %c0_3 = arith.constant 0 : index
    %12 = vector.load %arg2[%c0_2, %11, %c0_3] : memref<2x16x128xf32, #tpu.memory_space<vmem>>, vector<2x1x128xf32>
    %13 = arith.addf %10, %12 : vector<2x1x128xf32>
    %cst = arith.constant 5.000000e-01 : f32
    %14 = vector.broadcast %cst : f32 to vector<2x1x128xf32>
    %15 = arith.mulf %13, %14 : vector<2x1x128xf32>
    %c0_4 = arith.constant 0 : index
    %c0_5 = arith.constant 0 : index
    %c0_6 = arith.constant 0 : index
    %16 = vector.load %arg3[%c0_4, %c0_5, %c0_6] : memref<2x16x128xf32, #tpu.memory_space<vmem>>, vector<2x1x128xf32>
    tpu.vector_store %arg3[%c0_4, %c0_5, %c0_6], %15 {strides = array<i32>} : memref<2x16x128xf32, #tpu.memory_space<vmem>>, vector<2x1x128xf32>,
    %c1_i32_7 = arith.constant 1 : i32
    %17 = arith.addi %0, %c1_i32_7 : i32
    %c2_i32_8 = arith.constant 2 : i32
    %18 = arith.muli %c2_i32_8, %17 : i32
    %19 = arith.index_cast %18 : i32 to index
    %20 = memref.load %arg1[%19] : memref<64xi32, #tpu.memory_space<smem>>
    %c2_i32_9 = arith.constant 2 : i32
    %21 = arith.muli %c2_i32_9, %17 : i32
    %c1_i32_10 = arith.constant 1 : i32
    %22 = arith.addi %21, %c1_i32_10 : i32
    %23 = arith.index_cast %22 : i32 to index
    %24 = memref.load %arg1[%23] : memref<64xi32, #tpu.memory_space<smem>>
    %c0_11 = arith.constant 0 : index
    %25 = arith.index_cast %20 : i32 to index
    %c0_12 = arith.constant 0 : index
    %26 = vector.load %arg2[%c0_11, %25, %c0_12] : memref<2x16x128xf32, #tpu.memory_space<vmem>>, vector<2x1x128xf32>
    %c0_13 = arith.constant 0 : index
    %27 = arith.index_cast %24 : i32 to index
    %c0_14 = arith.constant 0 : index
    %28 = vector.load %arg2[%c0_13, %27, %c0_14] : memref<2x16x128xf32, #tpu.memory_space<vmem>>, vector<2x1x128xf32>
    %29 = arith.addf %26, %28 : vector<2x1x128xf32>
    %cst_15 = arith.constant 5.000000e-01 : f32
    %30 = vector.broadcast %cst_15 : f32 to vector<2x1x128xf32>
    %31 = arith.mulf %29, %30 : vector<2x1x128xf32>
    %c0_16 = arith.constant 0 : index
    %c1 = arith.constant 1 : index
    %c0_17 = arith.constant 0 : index
    %32 = vector.load %arg3[%c0_16, %c1, %c0_17] : memref<2x16x128xf32, #tpu.memory_space<vmem>>, vector<2x1x128xf32>
    tpu.vector_store %arg3[%c0_16, %c1, %c0_17], %31 {strides = array<i32>} : memref<2x16x128xf32, #tpu.memory_space<vmem>>, vector<2x1x128xf32>,
    %c2_i32_18 = arith.constant 2 : i32
    %33 = arith.addi %0, %c2_i32_18 : i32
    %c2_i32_19 = arith.constant 2 : i32
    %34 = arith.muli %c2_i32_19, %33 : i32
    %35 = arith.index_cast %34 : i32 to index
    %36 = memref.load %arg1[%35] : memref<64xi32, #tpu.memory_space<smem>>
    %c2_i32_20 = arith.constant 2 : i32
    %37 = arith.muli %c2_i32_20, %33 : i32
    %c1_i32_21 = arith.constant 1 : i32
    %38 = arith.addi %37, %c1_i32_21 : i32
    %39 = arith.index_cast %38 : i32 to index
    %40 = memref.load %arg1[%39] : memref<64xi32, #tpu.memory_space<smem>>
    %c0_22 = arith.constant 0 : index
    %41 = arith.index_cast %36 : i32 to index
    %c0_23 = arith.constant 0 : index
    %42 = vector.load %arg2[%c0_22, %41, %c0_23] : memref<2x16x128xf32, #tpu.memory_space<vmem>>, vector<2x1x128xf32>
    %c0_24 = arith.constant 0 : index
    %43 = arith.index_cast %40 : i32 to index
    %c0_25 = arith.constant 0 : index
    %44 = vector.load %arg2[%c0_24, %43, %c0_25] : memref<2x16x128xf32, #tpu.memory_space<vmem>>, vector<2x1x128xf32>
    %45 = arith.addf %42, %44 : vector<2x1x128xf32>
    %cst_26 = arith.constant 5.000000e-01 : f32
    %46 = vector.broadcast %cst_26 : f32 to vector<2x1x128xf32>
    %47 = arith.mulf %45, %46 : vector<2x1x128xf32>
    %c0_27 = arith.constant 0 : index
    %c2 = arith.constant 2 : index
    %c0_28 = arith.constant 0 : index
    %48 = vector.load %arg3[%c0_27, %c2, %c0_28] : memref<2x16x128xf32, #tpu.memory_space<vmem>>, vector<2x1x128xf32>
    tpu.vector_store %arg3[%c0_27, %c2, %c0_28], %47 {strides = array<i32>} : memref<2x16x128xf32, #tpu.memory_space<vmem>>, vector<2x1x128xf32>,
    %c3_i32 = arith.constant 3 : i32
    %49 = arith.addi %0, %c3_i32 : i32
    %c2_i32_29 = arith.constant 2 : i32
    %50 = arith.muli %c2_i32_29, %49 : i32
    %51 = arith.index_cast %50 : i32 to index
    %52 = memref.load %arg1[%51] : memref<64xi32, #tpu.memory_space<smem>>
    %c2_i32_30 = arith.constant 2 : i32
    %53 = arith.muli %c2_i32_30, %49 : i32
    %c1_i32_31 = arith.constant 1 : i32
    %54 = arith.addi %53, %c1_i32_31 : i32
    %55 = arith.index_cast %54 : i32 to index
    %56 = memref.load %arg1[%55] : memref<64xi32, #tpu.memory_space<smem>>
    %c0_32 = arith.constant 0 : index
    %57 = arith.index_cast %52 : i32 to index
    %c0_33 = arith.constant 0 : index
    %58 = vector.load %arg2[%c0_32, %57, %c0_33] : memref<2x16x128xf32, #tpu.memory_space<vmem>>, vector<2x1x128xf32>
    %c0_34 = arith.constant 0 : index
    %59 = arith.index_cast %56 : i32 to index
    %c0_35 = arith.constant 0 : index
    %60 = vector.load %arg2[%c0_34, %59, %c0_35] : memref<2x16x128xf32, #tpu.memory_space<vmem>>, vector<2x1x128xf32>
    %61 = arith.addf %58, %60 : vector<2x1x128xf32>
    %cst_36 = arith.constant 5.000000e-01 : f32
    %62 = vector.broadcast %cst_36 : f32 to vector<2x1x128xf32>
    %63 = arith.mulf %61, %62 : vector<2x1x128xf32>
    %c0_37 = arith.constant 0 : index
    %c3 = arith.constant 3 : index
    %c0_38 = arith.constant 0 : index
    %64 = vector.load %arg3[%c0_37, %c3, %c0_38] : memref<2x16x128xf32, #tpu.memory_space<vmem>>, vector<2x1x128xf32>
    tpu.vector_store %arg3[%c0_37, %c3, %c0_38], %63 {strides = array<i32>} : memref<2x16x128xf32, #tpu.memory_space<vmem>>, vector<2x1x128xf32>,
    %c4_i32 = arith.constant 4 : i32
    %65 = arith.addi %0, %c4_i32 : i32
    %c2_i32_39 = arith.constant 2 : i32
    %66 = arith.muli %c2_i32_39, %65 : i32
    %67 = arith.index_cast %66 : i32 to index
    %68 = memref.load %arg1[%67] : memref<64xi32, #tpu.memory_space<smem>>
    %c2_i32_40 = arith.constant 2 : i32
    %69 = arith.muli %c2_i32_40, %65 : i32
    %c1_i32_41 = arith.constant 1 : i32
    %70 = arith.addi %69, %c1_i32_41 : i32
    %71 = arith.index_cast %70 : i32 to index
    %72 = memref.load %arg1[%71] : memref<64xi32, #tpu.memory_space<smem>>
    %c0_42 = arith.constant 0 : index
    %73 = arith.index_cast %68 : i32 to index
    %c0_43 = arith.constant 0 : index
    %74 = vector.load %arg2[%c0_42, %73, %c0_43] : memref<2x16x128xf32, #tpu.memory_space<vmem>>, vector<2x1x128xf32>
    %c0_44 = arith.constant 0 : index
    %75 = arith.index_cast %72 : i32 to index
    %c0_45 = arith.constant 0 : index
    %76 = vector.load %arg2[%c0_44, %75, %c0_45] : memref<2x16x128xf32, #tpu.memory_space<vmem>>, vector<2x1x128xf32>
    %77 = arith.addf %74, %76 : vector<2x1x128xf32>
    %cst_46 = arith.constant 5.000000e-01 : f32
    %78 = vector.broadcast %cst_46 : f32 to vector<2x1x128xf32>
    %79 = arith.mulf %77, %78 : vector<2x1x128xf32>
    %c0_47 = arith.constant 0 : index
    %c4 = arith.constant 4 : index
    %c0_48 = arith.constant 0 : index
    %80 = vector.load %arg3[%c0_47, %c4, %c0_48] : memref<2x16x128xf32, #tpu.memory_space<vmem>>, vector<2x1x128xf32>
    tpu.vector_store %arg3[%c0_47, %c4, %c0_48], %79 {strides = array<i32>} : memref<2x16x128xf32, #tpu.memory_space<vmem>>, vector<2x1x128xf32>,
    %c5_i32 = arith.constant 5 : i32
    %81 = arith.addi %0, %c5_i32 : i32
    %c2_i32_49 = arith.constant 2 : i32
    %82 = arith.muli %c2_i32_49, %81 : i32
    %83 = arith.index_cast %82 : i32 to index
    %84 = memref.load %arg1[%83] : memref<64xi32, #tpu.memory_space<smem>>
    %c2_i32_50 = arith.constant 2 : i32
    %85 = arith.muli %c2_i32_50, %81 : i32
    %c1_i32_51 = arith.constant 1 : i32
    %86 = arith.addi %85, %c1_i32_51 : i32
    %87 = arith.index_cast %86 : i32 to index
    %88 = memref.load %arg1[%87] : memref<64xi32, #tpu.memory_space<smem>>
    %c0_52 = arith.constant 0 : index
    %89 = arith.index_cast %84 : i32 to index
    %c0_53 = arith.constant 0 : index
    %90 = vector.load %arg2[%c0_52, %89, %c0_53] : memref<2x16x128xf32, #tpu.memory_space<vmem>>, vector<2x1x128xf32>
    %c0_54 = arith.constant 0 : index
    %91 = arith.index_cast %88 : i32 to index
    %c0_55 = arith.constant 0 : index
    %92 = vector.load %arg2[%c0_54, %91, %c0_55] : memref<2x16x128xf32, #tpu.memory_space<vmem>>, vector<2x1x128xf32>
    %93 = arith.addf %90, %92 : vector<2x1x128xf32>
    %cst_56 = arith.constant 5.000000e-01 : f32
    %94 = vector.broadcast %cst_56 : f32 to vector<2x1x128xf32>
    %95 = arith.mulf %93, %94 : vector<2x1x128xf32>
    %c0_57 = arith.constant 0 : index
    %c5 = arith.constant 5 : index
    %c0_58 = arith.constant 0 : index
    %96 = vector.load %arg3[%c0_57, %c5, %c0_58] : memref<2x16x128xf32, #tpu.memory_space<vmem>>, vector<2x1x128xf32>
    tpu.vector_store %arg3[%c0_57, %c5, %c0_58], %95 {strides = array<i32>} : memref<2x16x128xf32, #tpu.memory_space<vmem>>, vector<2x1x128xf32>,
    %c6_i32 = arith.constant 6 : i32
    %97 = arith.addi %0, %c6_i32 : i32
    %c2_i32_59 = arith.constant 2 : i32
    %98 = arith.muli %c2_i32_59, %97 : i32
    %99 = arith.index_cast %98 : i32 to index
    %100 = memref.load %arg1[%99] : memref<64xi32, #tpu.memory_space<smem>>
    %c2_i32_60 = arith.constant 2 : i32
    %101 = arith.muli %c2_i32_60, %97 : i32
    %c1_i32_61 = arith.constant 1 : i32
    %102 = arith.addi %101, %c1_i32_61 : i32
    %103 = arith.index_cast %102 : i32 to index
    %104 = memref.load %arg1[%103] : memref<64xi32, #tpu.memory_space<smem>>
    %c0_62 = arith.constant 0 : index
    %105 = arith.index_cast %100 : i32 to index
    %c0_63 = arith.constant 0 : index
    %106 = vector.load %arg2[%c0_62, %105, %c0_63] : memref<2x16x128xf32, #tpu.memory_space<vmem>>, vector<2x1x128xf32>
    %c0_64 = arith.constant 0 : index
    %107 = arith.index_cast %104 : i32 to index
    %c0_65 = arith.constant 0 : index
    %108 = vector.load %arg2[%c0_64, %107, %c0_65] : memref<2x16x128xf32, #tpu.memory_space<vmem>>, vector<2x1x128xf32>
    %109 = arith.addf %106, %108 : vector<2x1x128xf32>
    %cst_66 = arith.constant 5.000000e-01 : f32
    %110 = vector.broadcast %cst_66 : f32 to vector<2x1x128xf32>
    %111 = arith.mulf %109, %110 : vector<2x1x128xf32>
    %c0_67 = arith.constant 0 : index
    %c6 = arith.constant 6 : index
    %c0_68 = arith.constant 0 : index
    %112 = vector.load %arg3[%c0_67, %c6, %c0_68] : memref<2x16x128xf32, #tpu.memory_space<vmem>>, vector<2x1x128xf32>
    tpu.vector_store %arg3[%c0_67, %c6, %c0_68], %111 {strides = array<i32>} : memref<2x16x128xf32, #tpu.memory_space<vmem>>, vector<2x1x128xf32>,
    %c7_i32 = arith.constant 7 : i32
    %113 = arith.addi %0, %c7_i32 : i32
    %c2_i32_69 = arith.constant 2 : i32
    %114 = arith.muli %c2_i32_69, %113 : i32
    %115 = arith.index_cast %114 : i32 to index
    %116 = memref.load %arg1[%115] : memref<64xi32, #tpu.memory_space<smem>>
    %c2_i32_70 = arith.constant 2 : i32
    %117 = arith.muli %c2_i32_70, %113 : i32
    %c1_i32_71 = arith.constant 1 : i32
    %118 = arith.addi %117, %c1_i32_71 : i32
    %119 = arith.index_cast %118 : i32 to index
    %120 = memref.load %arg1[%119] : memref<64xi32, #tpu.memory_space<smem>>
    %c0_72 = arith.constant 0 : index
    %121 = arith.index_cast %116 : i32 to index
    %c0_73 = arith.constant 0 : index
    %122 = vector.load %arg2[%c0_72, %121, %c0_73] : memref<2x16x128xf32, #tpu.memory_space<vmem>>, vector<2x1x128xf32>
    %c0_74 = arith.constant 0 : index
    %123 = arith.index_cast %120 : i32 to index
    %c0_75 = arith.constant 0 : index
    %124 = vector.load %arg2[%c0_74, %123, %c0_75] : memref<2x16x128xf32, #tpu.memory_space<vmem>>, vector<2x1x128xf32>
    %125 = arith.addf %122, %124 : vector<2x1x128xf32>
    %cst_76 = arith.constant 5.000000e-01 : f32
    %126 = vector.broadcast %cst_76 : f32 to vector<2x1x128xf32>
    %127 = arith.mulf %125, %126 : vector<2x1x128xf32>
    %c0_77 = arith.constant 0 : index
    %c7 = arith.constant 7 : index
    %c0_78 = arith.constant 0 : index
    %128 = vector.load %arg3[%c0_77, %c7, %c0_78] : memref<2x16x128xf32, #tpu.memory_space<vmem>>, vector<2x1x128xf32>
    tpu.vector_store %arg3[%c0_77, %c7, %c0_78], %127 {strides = array<i32>} : memref<2x16x128xf32, #tpu.memory_space<vmem>>, vector<2x1x128xf32>,
    %c8_i32 = arith.constant 8 : i32
    %129 = arith.addi %0, %c8_i32 : i32
    %c2_i32_79 = arith.constant 2 : i32
    %130 = arith.muli %c2_i32_79, %129 : i32
    %131 = arith.index_cast %130 : i32 to index
    %132 = memref.load %arg1[%131] : memref<64xi32, #tpu.memory_space<smem>>
    %c2_i32_80 = arith.constant 2 : i32
    %133 = arith.muli %c2_i32_80, %129 : i32
    %c1_i32_81 = arith.constant 1 : i32
    %134 = arith.addi %133, %c1_i32_81 : i32
    %135 = arith.index_cast %134 : i32 to index
    %136 = memref.load %arg1[%135] : memref<64xi32, #tpu.memory_space<smem>>
    %c0_82 = arith.constant 0 : index
    %137 = arith.index_cast %132 : i32 to index
    %c0_83 = arith.constant 0 : index
    %138 = vector.load %arg2[%c0_82, %137, %c0_83] : memref<2x16x128xf32, #tpu.memory_space<vmem>>, vector<2x1x128xf32>
    %c0_84 = arith.constant 0 : index
    %139 = arith.index_cast %136 : i32 to index
    %c0_85 = arith.constant 0 : index
    %140 = vector.load %arg2[%c0_84, %139, %c0_85] : memref<2x16x128xf32, #tpu.memory_space<vmem>>, vector<2x1x128xf32>
    %141 = arith.addf %138, %140 : vector<2x1x128xf32>
    %cst_86 = arith.constant 5.000000e-01 : f32
    %142 = vector.broadcast %cst_86 : f32 to vector<2x1x128xf32>
    %143 = arith.mulf %141, %142 : vector<2x1x128xf32>
    %c0_87 = arith.constant 0 : index
    %c8 = arith.constant 8 : index
    %c0_88 = arith.constant 0 : index
    %144 = vector.load %arg3[%c0_87, %c8, %c0_88] : memref<2x16x128xf32, #tpu.memory_space<vmem>>, vector<2x1x128xf32>
    tpu.vector_store %arg3[%c0_87, %c8, %c0_88], %143 {strides = array<i32>} : memref<2x16x128xf32, #tpu.memory_space<vmem>>, vector<2x1x128xf32>,
    %c9_i32 = arith.constant 9 : i32
    %145 = arith.addi %0, %c9_i32 : i32
    %c2_i32_89 = arith.constant 2 : i32
    %146 = arith.muli %c2_i32_89, %145 : i32
    %147 = arith.index_cast %146 : i32 to index
    %148 = memref.load %arg1[%147] : memref<64xi32, #tpu.memory_space<smem>>
    %c2_i32_90 = arith.constant 2 : i32
    %149 = arith.muli %c2_i32_90, %145 : i32
    %c1_i32_91 = arith.constant 1 : i32
    %150 = arith.addi %149, %c1_i32_91 : i32
    %151 = arith.index_cast %150 : i32 to index
    %152 = memref.load %arg1[%151] : memref<64xi32, #tpu.memory_space<smem>>
    %c0_92 = arith.constant 0 : index
    %153 = arith.index_cast %148 : i32 to index
    %c0_93 = arith.constant 0 : index
    %154 = vector.load %arg2[%c0_92, %153, %c0_93] : memref<2x16x128xf32, #tpu.memory_space<vmem>>, vector<2x1x128xf32>
    %c0_94 = arith.constant 0 : index
    %155 = arith.index_cast %152 : i32 to index
    %c0_95 = arith.constant 0 : index
    %156 = vector.load %arg2[%c0_94, %155, %c0_95] : memref<2x16x128xf32, #tpu.memory_space<vmem>>, vector<2x1x128xf32>
    %157 = arith.addf %154, %156 : vector<2x1x128xf32>
    %cst_96 = arith.constant 5.000000e-01 : f32
    %158 = vector.broadcast %cst_96 : f32 to vector<2x1x128xf32>
    %159 = arith.mulf %157, %158 : vector<2x1x128xf32>
    %c0_97 = arith.constant 0 : index
    %c9 = arith.constant 9 : index
    %c0_98 = arith.constant 0 : index
    %160 = vector.load %arg3[%c0_97, %c9, %c0_98] : memref<2x16x128xf32, #tpu.memory_space<vmem>>, vector<2x1x128xf32>
    tpu.vector_store %arg3[%c0_97, %c9, %c0_98], %159 {strides = array<i32>} : memref<2x16x128xf32, #tpu.memory_space<vmem>>, vector<2x1x128xf32>,
    %c10_i32 = arith.constant 10 : i32
    %161 = arith.addi %0, %c10_i32 : i32
    %c2_i32_99 = arith.constant 2 : i32
    %162 = arith.muli %c2_i32_99, %161 : i32
    %163 = arith.index_cast %162 : i32 to index
    %164 = memref.load %arg1[%163] : memref<64xi32, #tpu.memory_space<smem>>
    %c2_i32_100 = arith.constant 2 : i32
    %165 = arith.muli %c2_i32_100, %161 : i32
    %c1_i32_101 = arith.constant 1 : i32
    %166 = arith.addi %165, %c1_i32_101 : i32
    %167 = arith.index_cast %166 : i32 to index
    %168 = memref.load %arg1[%167] : memref<64xi32, #tpu.memory_space<smem>>
    %c0_102 = arith.constant 0 : index
    %169 = arith.index_cast %164 : i32 to index
    %c0_103 = arith.constant 0 : index
    %170 = vector.load %arg2[%c0_102, %169, %c0_103] : memref<2x16x128xf32, #tpu.memory_space<vmem>>, vector<2x1x128xf32>
    %c0_104 = arith.constant 0 : index
    %171 = arith.index_cast %168 : i32 to index
    %c0_105 = arith.constant 0 : index
    %172 = vector.load %arg2[%c0_104, %171, %c0_105] : memref<2x16x128xf32, #tpu.memory_space<vmem>>, vector<2x1x128xf32>
    %173 = arith.addf %170, %172 : vector<2x1x128xf32>
    %cst_106 = arith.constant 5.000000e-01 : f32
    %174 = vector.broadcast %cst_106 : f32 to vector<2x1x128xf32>
    %175 = arith.mulf %173, %174 : vector<2x1x128xf32>
    %c0_107 = arith.constant 0 : index
    %c10 = arith.constant 10 : index
    %c0_108 = arith.constant 0 : index
    %176 = vector.load %arg3[%c0_107, %c10, %c0_108] : memref<2x16x128xf32, #tpu.memory_space<vmem>>, vector<2x1x128xf32>
    tpu.vector_store %arg3[%c0_107, %c10, %c0_108], %175 {strides = array<i32>} : memref<2x16x128xf32, #tpu.memory_space<vmem>>, vector<2x1x128xf32>,
    %c11_i32 = arith.constant 11 : i32
    %177 = arith.addi %0, %c11_i32 : i32
    %c2_i32_109 = arith.constant 2 : i32
    %178 = arith.muli %c2_i32_109, %177 : i32
    %179 = arith.index_cast %178 : i32 to index
    %180 = memref.load %arg1[%179] : memref<64xi32, #tpu.memory_space<smem>>
    %c2_i32_110 = arith.constant 2 : i32
    %181 = arith.muli %c2_i32_110, %177 : i32
    %c1_i32_111 = arith.constant 1 : i32
    %182 = arith.addi %181, %c1_i32_111 : i32
    %183 = arith.index_cast %182 : i32 to index
    %184 = memref.load %arg1[%183] : memref<64xi32, #tpu.memory_space<smem>>
    %c0_112 = arith.constant 0 : index
    %185 = arith.index_cast %180 : i32 to index
    %c0_113 = arith.constant 0 : index
    %186 = vector.load %arg2[%c0_112, %185, %c0_113] : memref<2x16x128xf32, #tpu.memory_space<vmem>>, vector<2x1x128xf32>
    %c0_114 = arith.constant 0 : index
    %187 = arith.index_cast %184 : i32 to index
    %c0_115 = arith.constant 0 : index
    %188 = vector.load %arg2[%c0_114, %187, %c0_115] : memref<2x16x128xf32, #tpu.memory_space<vmem>>, vector<2x1x128xf32>
    %189 = arith.addf %186, %188 : vector<2x1x128xf32>
    %cst_116 = arith.constant 5.000000e-01 : f32
    %190 = vector.broadcast %cst_116 : f32 to vector<2x1x128xf32>
    %191 = arith.mulf %189, %190 : vector<2x1x128xf32>
    %c0_117 = arith.constant 0 : index
    %c11 = arith.constant 11 : index
    %c0_118 = arith.constant 0 : index
    %192 = vector.load %arg3[%c0_117, %c11, %c0_118] : memref<2x16x128xf32, #tpu.memory_space<vmem>>, vector<2x1x128xf32>
    tpu.vector_store %arg3[%c0_117, %c11, %c0_118], %191 {strides = array<i32>} : memref<2x16x128xf32, #tpu.memory_space<vmem>>, vector<2x1x128xf32>,
    %c12_i32 = arith.constant 12 : i32
    %193 = arith.addi %0, %c12_i32 : i32
    %c2_i32_119 = arith.constant 2 : i32
    %194 = arith.muli %c2_i32_119, %193 : i32
    %195 = arith.index_cast %194 : i32 to index
    %196 = memref.load %arg1[%195] : memref<64xi32, #tpu.memory_space<smem>>
    %c2_i32_120 = arith.constant 2 : i32
    %197 = arith.muli %c2_i32_120, %193 : i32
    %c1_i32_121 = arith.constant 1 : i32
    %198 = arith.addi %197, %c1_i32_121 : i32
    %199 = arith.index_cast %198 : i32 to index
    %200 = memref.load %arg1[%199] : memref<64xi32, #tpu.memory_space<smem>>
    %c0_122 = arith.constant 0 : index
    %201 = arith.index_cast %196 : i32 to index
    %c0_123 = arith.constant 0 : index
    %202 = vector.load %arg2[%c0_122, %201, %c0_123] : memref<2x16x128xf32, #tpu.memory_space<vmem>>, vector<2x1x128xf32>
    %c0_124 = arith.constant 0 : index
    %203 = arith.index_cast %200 : i32 to index
    %c0_125 = arith.constant 0 : index
    %204 = vector.load %arg2[%c0_124, %203, %c0_125] : memref<2x16x128xf32, #tpu.memory_space<vmem>>, vector<2x1x128xf32>
    %205 = arith.addf %202, %204 : vector<2x1x128xf32>
    %cst_126 = arith.constant 5.000000e-01 : f32
    %206 = vector.broadcast %cst_126 : f32 to vector<2x1x128xf32>
    %207 = arith.mulf %205, %206 : vector<2x1x128xf32>
    %c0_127 = arith.constant 0 : index
    %c12 = arith.constant 12 : index
    %c0_128 = arith.constant 0 : index
    %208 = vector.load %arg3[%c0_127, %c12, %c0_128] : memref<2x16x128xf32, #tpu.memory_space<vmem>>, vector<2x1x128xf32>
    tpu.vector_store %arg3[%c0_127, %c12, %c0_128], %207 {strides = array<i32>} : memref<2x16x128xf32, #tpu.memory_space<vmem>>, vector<2x1x128xf32>,
    %c13_i32 = arith.constant 13 : i32
    %209 = arith.addi %0, %c13_i32 : i32
    %c2_i32_129 = arith.constant 2 : i32
    %210 = arith.muli %c2_i32_129, %209 : i32
    %211 = arith.index_cast %210 : i32 to index
    %212 = memref.load %arg1[%211] : memref<64xi32, #tpu.memory_space<smem>>
    %c2_i32_130 = arith.constant 2 : i32
    %213 = arith.muli %c2_i32_130, %209 : i32
    %c1_i32_131 = arith.constant 1 : i32
    %214 = arith.addi %213, %c1_i32_131 : i32
    %215 = arith.index_cast %214 : i32 to index
    %216 = memref.load %arg1[%215] : memref<64xi32, #tpu.memory_space<smem>>
    %c0_132 = arith.constant 0 : index
    %217 = arith.index_cast %212 : i32 to index
    %c0_133 = arith.constant 0 : index
    %218 = vector.load %arg2[%c0_132, %217, %c0_133] : memref<2x16x128xf32, #tpu.memory_space<vmem>>, vector<2x1x128xf32>
    %c0_134 = arith.constant 0 : index
    %219 = arith.index_cast %216 : i32 to index
    %c0_135 = arith.constant 0 : index
    %220 = vector.load %arg2[%c0_134, %219, %c0_135] : memref<2x16x128xf32, #tpu.memory_space<vmem>>, vector<2x1x128xf32>
    %221 = arith.addf %218, %220 : vector<2x1x128xf32>
    %cst_136 = arith.constant 5.000000e-01 : f32
    %222 = vector.broadcast %cst_136 : f32 to vector<2x1x128xf32>
    %223 = arith.mulf %221, %222 : vector<2x1x128xf32>
    %c0_137 = arith.constant 0 : index
    %c13 = arith.constant 13 : index
    %c0_138 = arith.constant 0 : index
    %224 = vector.load %arg3[%c0_137, %c13, %c0_138] : memref<2x16x128xf32, #tpu.memory_space<vmem>>, vector<2x1x128xf32>
    tpu.vector_store %arg3[%c0_137, %c13, %c0_138], %223 {strides = array<i32>} : memref<2x16x128xf32, #tpu.memory_space<vmem>>, vector<2x1x128xf32>,
    %c14_i32 = arith.constant 14 : i32
    %225 = arith.addi %0, %c14_i32 : i32
    %c2_i32_139 = arith.constant 2 : i32
    %226 = arith.muli %c2_i32_139, %225 : i32
    %227 = arith.index_cast %226 : i32 to index
    %228 = memref.load %arg1[%227] : memref<64xi32, #tpu.memory_space<smem>>
    %c2_i32_140 = arith.constant 2 : i32
    %229 = arith.muli %c2_i32_140, %225 : i32
    %c1_i32_141 = arith.constant 1 : i32
    %230 = arith.addi %229, %c1_i32_141 : i32
    %231 = arith.index_cast %230 : i32 to index
    %232 = memref.load %arg1[%231] : memref<64xi32, #tpu.memory_space<smem>>
    %c0_142 = arith.constant 0 : index
    %233 = arith.index_cast %228 : i32 to index
    %c0_143 = arith.constant 0 : index
    %234 = vector.load %arg2[%c0_142, %233, %c0_143] : memref<2x16x128xf32, #tpu.memory_space<vmem>>, vector<2x1x128xf32>
    %c0_144 = arith.constant 0 : index
    %235 = arith.index_cast %232 : i32 to index
    %c0_145 = arith.constant 0 : index
    %236 = vector.load %arg2[%c0_144, %235, %c0_145] : memref<2x16x128xf32, #tpu.memory_space<vmem>>, vector<2x1x128xf32>
    %237 = arith.addf %234, %236 : vector<2x1x128xf32>
    %cst_146 = arith.constant 5.000000e-01 : f32
    %238 = vector.broadcast %cst_146 : f32 to vector<2x1x128xf32>
    %239 = arith.mulf %237, %238 : vector<2x1x128xf32>
    %c0_147 = arith.constant 0 : index
    %c14 = arith.constant 14 : index
    %c0_148 = arith.constant 0 : index
    %240 = vector.load %arg3[%c0_147, %c14, %c0_148] : memref<2x16x128xf32, #tpu.memory_space<vmem>>, vector<2x1x128xf32>
    tpu.vector_store %arg3[%c0_147, %c14, %c0_148], %239 {strides = array<i32>} : memref<2x16x128xf32, #tpu.memory_space<vmem>>, vector<2x1x128xf32>,
    %c15_i32 = arith.constant 15 : i32
    %241 = arith.addi %0, %c15_i32 : i32
    %c2_i32_149 = arith.constant 2 : i32
    %242 = arith.muli %c2_i32_149, %241 : i32
    %243 = arith.index_cast %242 : i32 to index
    %244 = memref.load %arg1[%243] : memref<64xi32, #tpu.memory_space<smem>>
    %c2_i32_150 = arith.constant 2 : i32
    %245 = arith.muli %c2_i32_150, %241 : i32
    %c1_i32_151 = arith.constant 1 : i32
    %246 = arith.addi %245, %c1_i32_151 : i32
    %247 = arith.index_cast %246 : i32 to index
    %248 = memref.load %arg1[%247] : memref<64xi32, #tpu.memory_space<smem>>
    %c0_152 = arith.constant 0 : index
    %249 = arith.index_cast %244 : i32 to index
    %c0_153 = arith.constant 0 : index
    %250 = vector.load %arg2[%c0_152, %249, %c0_153] : memref<2x16x128xf32, #tpu.memory_space<vmem>>, vector<2x1x128xf32>
    %c0_154 = arith.constant 0 : index
    %251 = arith.index_cast %248 : i32 to index
    %c0_155 = arith.constant 0 : index
    %252 = vector.load %arg2[%c0_154, %251, %c0_155] : memref<2x16x128xf32, #tpu.memory_space<vmem>>, vector<2x1x128xf32>
    %253 = arith.addf %250, %252 : vector<2x1x128xf32>
    %cst_156 = arith.constant 5.000000e-01 : f32
    %254 = vector.broadcast %cst_156 : f32 to vector<2x1x128xf32>
    %255 = arith.mulf %253, %254 : vector<2x1x128xf32>
    %c0_157 = arith.constant 0 : index
    %c15 = arith.constant 15 : index
    %c0_158 = arith.constant 0 : index
    %256 = vector.load %arg3[%c0_157, %c15, %c0_158] : memref<2x16x128xf32, #tpu.memory_space<vmem>>, vector<2x1x128xf32>
    tpu.vector_store %arg3[%c0_157, %c15, %c0_158], %255 {strides = array<i32>} : memref<2x16x128xf32, #tpu.memory_space<vmem>>, vector<2x1x128xf32>,
    return
  }
  func.func @transform_0(%arg0: i32, %arg1: memref<64xi32, #tpu.memory_space<smem>>) -> (i32, i32, i32) {
    %c0_i32 = arith.constant 0 : i32
    %c0_i32_0 = arith.constant 0 : i32
    %c0_i32_1 = arith.constant 0 : i32
    %c0_i32_2 = arith.constant 0 : i32
    return %c0_i32, %c0_i32_0, %c0_i32_1 : i32, i32, i32
  }
  func.func @transform_1(%arg0: i32, %arg1: memref<64xi32, #tpu.memory_space<smem>>) -> (i32, i32, i32) {
    %c0_i32 = arith.constant 0 : i32
    %c0_i32_0 = arith.constant 0 : i32
    %c0_i32_1 = arith.constant 0 : i32
    return %c0_i32, %arg0, %c0_i32_0 : i32, i32, i32
  }
}

</mosaic_0001>

<llo_original>
// kernel: tpu_custom_call.1
$region0: #{tpu_custom_call.1}
  #allocation0 [shape = 'u32[]', space=smem, size = 0x4, offset = 0x4, fixed_abs, tag = 'smem constant byte address 0x4 - core index']
  #allocation1 [shape = 'u32[144,128]{1,0:T(1,128)}', space=vmem, size = 0x12000, scoped, tag = 'internal scratch']
  #allocation2 [shape = 's32[1]{0}', space=sflag, size = 0x4, scoped, tag = 'scoped memory for tpu_custom_call.1']
  #allocation3 [shape = 'u8[512]{0}', space=smem, size = 0x200, scoped, tag = 'prefetched SMEM operand 0']
  #allocation8 [shape = 's32[]', space=sflag, size = 0x4, offset = 0, fixed_abs, tag = 'sflag constant byte address 0x0 - dummy sync flag']
  %s0 = inlined_call_operand.hbm [shape: s32[64], index: 0, kind: input, shape index: {}]
  %s1 = inlined_call_operand.hbm [shape: f32[2,16,128], index: 1, kind: input, shape index: {}]
  %s2 = inlined_call_operand.hbm [shape: f32[2,32,128], index: 2, kind: output, shape index: {}]
  %s3 = sld [smem:[#allocation0]]
  $region41: #{tpu_custom_call.1} parent=0
    _
  %s5 = ssub.s32 1, %s3
  %s6 = scalar_select 0, %s5, %s3
  %8 = dma.hbm_to_smem %s0, 16, [#allocation3], [#allocation2]
  %9 = dma.done [#allocation2], 16
  %10 = sfence
  $region1: #{tpu_custom_call.1} parent=0
    #allocation4 [shape = 'u8[16384]{0}', space=vmem, size = 0x4000, scoped, tag = 'input window, operand 1, single buffered']
    #allocation5 [shape = 's32[2]{0}', space=sflag, size = 0x8, scoped, tag = 'scoped memory for tpu_custom_call.1']
    #allocation6 [shape = 's32[2]{0}', space=sflag, size = 0x8, scoped, tag = 'scoped memory for tpu_custom_call.1']
    #allocation7 [shape = 'u8[32768]{0}', space=vmem, size = 0x8000, scoped, tag = 'output window, operand 0']
    %11 = vsyncpa [#allocation5], 0
    %12 = vsyncpa [#allocation6], 0
    %s13 = scalar_lea.sflag [#allocation6], 1
    %14 = vsyncpa %s13, 0
    loop: start=0, step=1, limit=4
    $region2: #{tpu_custom_call.1} parent=1 // loop_pre_header
      _
    $region3: #{tpu_custom_call.1} parent=1 // loop_header
      %s16 = sphi 0, %s20
      %p17 = scmp.ge.s32.totalorder %s16, 4
      %s24 = sphi 0, %s24
      %s26 = sphi 0, %s24
      %s27 = sphi 0, %s26
      %s41 = sphi 0, %s27
      %s47 = sphi 0, %s49
      %s50 = sphi 0, %s47
      %s51 = sphi 0, %s50
      %s67 = sphi 0, %s51
    $region4: #{tpu_custom_call.1} parent=1 // loop_header_branch
      %19 = sbr.rel (%p17) target = $region8
    $region5: #{tpu_custom_call.1} parent=1 // loop_body
      %s21 = ssub.s32 %s16, 1
      %s22 = ssub.s32 %s16, 2
      %s23 = sadd.s32 %s16, 1
      %s25 = sadd.s32 %s24, 1
      %p28 = scmp.eq.s32.totalorder %s16, 1
      %p29 = scmp.ne.s32.totalorder %s24, %s26
      %p30 = scmp.eq.s32.totalorder %s16, 0
      %p31 = por %p29, %p30
      %p32 = scmp.ne.s32.totalorder %s24, %s26
      %p33 = scmp.eq.s32.totalorder %s21, 1
      %p34 = por %p32, %p33
      %p35 = scmp.ne.s32.totalorder %s26, %s27
      %p36 = scmp.eq.s32.totalorder %s21, 0
      %p37 = por %p35, %p36
      %p38 = scmp.ne.s32.totalorder %s26, %s27
      %p39 = scmp.eq.s32.totalorder %s22, 1
      %p40 = por %p38, %p39
      %p42 = scmp.ne.s32.totalorder %s27, %s41
      %p43 = scmp.eq.s32.totalorder %s22, 0
      %p44 = por %p42, %p43
      %s45 = ssub.s32 %s16, %s23
      %p46 = scmp.eq.s32.totalorder %s45, 0
      %s48 = sadd.s32 %s47, 1
      %s49 = scalar_select %p46, %s47, %s48
      %p52 = pneg %p46
      %p53 = scmp.eq.s32.totalorder %s16, 1
      %p54 = por %p52, %p53
      %p55 = scmp.ne.s32.totalorder %s47, %s50
      %p56 = scmp.eq.s32.totalorder %s16, 0
      %p57 = por %p55, %p56
      %p58 = scmp.ne.s32.totalorder %s47, %s50
      %p59 = scmp.eq.s32.totalorder %s21, 1
      %p60 = por %p58, %p59
      %p61 = scmp.ne.s32.totalorder %s50, %s51
      %p62 = scmp.eq.s32.totalorder %s21, 0
      %p63 = por %p61, %p62
      %p64 = scmp.ne.s32.totalorder %s50, %s51
      %p65 = scmp.eq.s32.totalorder %s22, 1
      %p66 = por %p64, %p65
      %p68 = scmp.ne.s32.totalorder %s51, %s67
      %p69 = scmp.eq.s32.totalorder %s22, 0
      %p70 = por %p68, %p69
      %p71 = scmp.le.s32.totalorder 1, %s16
      %p72 = scmp.lt.s32.totalorder %s16, 3
      %p73 = pnand %p71, %p72
      %p74 = pneg %p73
      // Predicated region
      $region9: #{tpu_custom_call.1} parent=5 // pred_check
        _
      $region10: #{tpu_custom_call.1} parent=5 // pred_check_branch
        %76 = sbr.rel (%p73) target = $region12
      $region11: #{tpu_custom_call.1} parent=5 // pred_region
        %s77 = ssub.s32 %s16, 1
        // Predicated region
        $region13: #{tpu_custom_call.1} parent=11 // pred_check
          %p78 = pneg %p37
        $region14: #{tpu_custom_call.1} parent=11 // pred_check_branch
          %80 = sbr.rel (%p78) target = $region16
        $region15: #{tpu_custom_call.1} parent=11 // pred_region
          %s82 = ssub.s32 512, 512
          %83 = vsyncadd [#allocation5], %s82
          %s84 = sshll.u32 [#allocation4], 4
          %s85 = int_to_ptr.vmem [resolvable:$true] %s84
          %90 = dma.hbm_to_vmem [thread:$0]  %s1, 512, %s85, [#allocation5], 128, 128, 8
        $region16: #{tpu_custom_call.1} parent=11 // pred_fallthru
          _
      $region12: #{tpu_custom_call.1} parent=5 // pred_fallthru
        _
      %p91 = scmp.lt.s32.totalorder %s16, 2
      // Predicated region
      $region17: #{tpu_custom_call.1} parent=5 // pred_check
        %p92 = pneg %p91
      $region18: #{tpu_custom_call.1} parent=5 // pred_check_branch
        %94 = sbr.rel (%p92) target = $region20
      $region19: #{tpu_custom_call.1} parent=5 // pred_region
        _
      $region20: #{tpu_custom_call.1} parent=5 // pred_fallthru
        _
      %p95 = scmp.le.s32.totalorder 1, %s16
      %p96 = scmp.lt.s32.totalorder %s16, 3
      %p97 = pnand %p95, %p96
      %p98 = pneg %p97
      // Predicated region
      $region21: #{tpu_custom_call.1} parent=5 // pred_check
        _
      $region22: #{tpu_custom_call.1} parent=5 // pred_check_branch
        %100 = sbr.rel (%p97) target = $region24
      $region23: #{tpu_custom_call.1} parent=5 // pred_region
        %s101 = ssub.s32 %s16, 1
        // Predicated region
        $region25: #{tpu_custom_call.1} parent=23 // pred_check
          %p102 = pneg %p37
        $region26: #{tpu_custom_call.1} parent=23 // pred_check_branch
          %104 = sbr.rel (%p102) target = $region28
        $region27: #{tpu_custom_call.1} parent=23 // pred_region
          %105 = dma.done [#allocation5], 512
        $region28: #{tpu_custom_call.1} parent=23 // pred_fallthru
          _
        %p106 = pneg %p37
        %p107 = pneg %p34
        %p108 = pneg %p63
        %p109 = pneg %p60
        %s110 = sand.u32 %s50, 1
        %s111 = scalar_lea.sflag [#allocation6], %s110
        %s112 = sand.u32 %s50, 1
        %s113 = smul.addr %s112, 32
        %s114 = scalar_lea.vmem [#allocation7], %s113
        %s115 = smul.u32 2, %s21
        %s116 = smul.u32 %s21, 16
        %s117 = smul.u32 %s21, 32
        %s118 = sld [smem:[#allocation3 + %s117]]
        %s119 = sadd.s32 %s117, 1
        %s120 = sld [smem:[#allocation3 + %s119]]
        %s121 = scalar_lea.vmem [#allocation4], %s118
        %v122 = vld [vmem:[%s121] sm:$0x1]
        %v123 = vld [vmem:[%s121 + $0x10] sm:$0x1]
        %s124 = scalar_lea.vmem [#allocation4], %s120
        %v125 = vld [vmem:[%s124] sm:$0x1]
        %v126 = vld [vmem:[%s124 + $0x10] sm:$0x1]
        %v127 = vadd.f32 %v122, %v125
        %v128 = vadd.f32 %v123, %v126
        %v129 = vmul.f32 %v127, 0.5
        %v130 = vmul.f32 %v128, 0.5
        %131 = vst [vmem:[%s114] sm:$0x1] %v129
        %132 = vst [vmem:[%s114 + $0x10] sm:$0x1] %v130
        %s133 = sadd.s32 %s116, 1
        %s134 = smul.u32 %s133, 2
        %s135 = sld [smem:[#allocation3 + %s134]]
        %s136 = sadd.s32 %s134, 1
        %s137 = sld [smem:[#allocation3 + %s136]]
        %s138 = scalar_lea.vmem [#allocation4], %s135
        %v139 = vld [vmem:[%s138] sm:$0x1]
        %v140 = vld [vmem:[%s138 + $0x10] sm:$0x1]
        %s141 = scalar_lea.vmem [#allocation4], %s137
        %v142 = vld [vmem:[%s141] sm:$0x1]
        %v143 = vld [vmem:[%s141 + $0x10] sm:$0x1]
        %v144 = vadd.f32 %v139, %v142
        %v145 = vadd.f32 %v140, %v143
        %v146 = vmul.f32 %v144, 0.5
        %v147 = vmul.f32 %v145, 0.5
        %148 = vst [vmem:[%s114 + $0x1] sm:$0x1] %v146
        %149 = vst [vmem:[%s114 + $0x11] sm:$0x1] %v147
        %s150 = sadd.s32 %s116, 2
        %s151 = smul.u32 %s150, 2
        %s152 = sld [smem:[#allocation3 + %s151]]
        %s153 = sadd.s32 %s151, 1
        %s154 = sld [smem:[#allocation3 + %s153]]
        %s155 = scalar_lea.vmem [#allocation4], %s152
        %v156 = vld [vmem:[%s155] sm:$0x1]
        %v157 = vld [vmem:[%s155 + $0x10] sm:$0x1]
        %s158 = scalar_lea.vmem [#allocation4], %s154
        %v159 = vld [vmem:[%s158] sm:$0x1]
        %v160 = vld [vmem:[%s158 + $0x10] sm:$0x1]
        %v161 = vadd.f32 %v156, %v159
        %v162 = vadd.f32 %v157, %v160
        %v163 = vmul.f32 %v161, 0.5
        %v164 = vmul.f32 %v162, 0.5
        %165 = vst [vmem:[%s114 + $0x2] sm:$0x1] %v163
        %166 = vst [vmem:[%s114 + $0x12] sm:$0x1] %v164
        %s167 = sadd.s32 %s116, 3
        %s168 = smul.u32 %s167, 2
        %s169 = sld [smem:[#allocation3 + %s168]]
        %s170 = sadd.s32 %s168, 1
        %s171 = sld [smem:[#allocation3 + %s170]]
        %s172 = scalar_lea.vmem [#allocation4], %s169
        %v173 = vld [vmem:[%s172] sm:$0x1]
        %v174 = vld [vmem:[%s172 + $0x10] sm:$0x1]
        %s175 = scalar_lea.vmem [#allocation4], %s171
        %v176 = vld [vmem:[%s175] sm:$0x1]
        %v177 = vld [vmem:[%s175 + $0x10] sm:$0x1]
        %v178 = vadd.f32 %v173, %v176
        %v179 = vadd.f32 %v174, %v177
        %v180 = vmul.f32 %v178, 0.5
        %v181 = vmul.f32 %v179, 0.5
        %182 = vst [vmem:[%s114 + $0x3] sm:$0x1] %v180
        %183 = vst [vmem:[%s114 + $0x13] sm:$0x1] %v181
        %s184 = sadd.s32 %s116, 4
        %s185 = smul.u32 %s184, 2
        %s186 = sld [smem:[#allocation3 + %s185]]
        %s187 = sadd.s32 %s185, 1
        %s188 = sld [smem:[#allocation3 + %s187]]
        %s189 = scalar_lea.vmem [#allocation4], %s186
        %v190 = vld [vmem:[%s189] sm:$0x1]
        %v191 = vld [vmem:[%s189 + $0x10] sm:$0x1]
        %s192 = scalar_lea.vmem [#allocation4], %s188
        %v193 = vld [vmem:[%s192] sm:$0x1]
        %v194 = vld [vmem:[%s192 + $0x10] sm:$0x1]
        %v195 = vadd.f32 %v190, %v193
        %v196 = vadd.f32 %v191, %v194
        %v197 = vmul.f32 %v195, 0.5
        %v198 = vmul.f32 %v196, 0.5
        %199 = vst [vmem:[%s114 + $0x4] sm:$0x1] %v197
        %200 = vst [vmem:[%s114 + $0x14] sm:$0x1] %v198
        %s201 = sadd.s32 %s116, 5
        %s202 = smul.u32 %s201, 2
        %s203 = sld [smem:[#allocation3 + %s202]]
        %s204 = sadd.s32 %s202, 1
        %s205 = sld [smem:[#allocation3 + %s204]]
        %s206 = scalar_lea.vmem [#allocation4], %s203
        %v207 = vld [vmem:[%s206] sm:$0x1]
        %v208 = vld [vmem:[%s206 + $0x10] sm:$0x1]
        %s209 = scalar_lea.vmem [#allocation4], %s205
        %v210 = vld [vmem:[%s209] sm:$0x1]
        %v211 = vld [vmem:[%s209 + $0x10] sm:$0x1]
        %v212 = vadd.f32 %v207, %v210
        %v213 = vadd.f32 %v208, %v211
        %v214 = vmul.f32 %v212, 0.5
        %v215 = vmul.f32 %v213, 0.5
        %216 = vst [vmem:[%s114 + $0x5] sm:$0x1] %v214
        %217 = vst [vmem:[%s114 + $0x15] sm:$0x1] %v215
        %s218 = sadd.s32 %s116, 6
        %s219 = smul.u32 %s218, 2
        %s220 = sld [smem:[#allocation3 + %s219]]
        %s221 = sadd.s32 %s219, 1
        %s222 = sld [smem:[#allocation3 + %s221]]
        %s223 = scalar_lea.vmem [#allocation4], %s220
        %v224 = vld [vmem:[%s223] sm:$0x1]
        %v225 = vld [vmem:[%s223 + $0x10] sm:$0x1]
        %s226 = scalar_lea.vmem [#allocation4], %s222
        %v227 = vld [vmem:[%s226] sm:$0x1]
        %v228 = vld [vmem:[%s226 + $0x10] sm:$0x1]
        %v229 = vadd.f32 %v224, %v227
        %v230 = vadd.f32 %v225, %v228
        %v231 = vmul.f32 %v229, 0.5
        %v232 = vmul.f32 %v230, 0.5
        %233 = vst [vmem:[%s114 + $0x6] sm:$0x1] %v231
        %234 = vst [vmem:[%s114 + $0x16] sm:$0x1] %v232
        %s235 = sadd.s32 %s116, 7
        %s236 = smul.u32 %s235, 2
        %s237 = sld [smem:[#allocation3 + %s236]]
        %s238 = sadd.s32 %s236, 1
        %s239 = sld [smem:[#allocation3 + %s238]]
        %s240 = scalar_lea.vmem [#allocation4], %s237
        %v241 = vld [vmem:[%s240] sm:$0x1]
        %v242 = vld [vmem:[%s240 + $0x10] sm:$0x1]
        %s243 = scalar_lea.vmem [#allocation4], %s239
        %v244 = vld [vmem:[%s243] sm:$0x1]
        %v245 = vld [vmem:[%s243 + $0x10] sm:$0x1]
        %v246 = vadd.f32 %v241, %v244
        %v247 = vadd.f32 %v242, %v245
        %v248 = vmul.f32 %v246, 0.5
        %v249 = vmul.f32 %v247, 0.5
        %250 = vst [vmem:[%s114 + $0x7] sm:$0x1] %v248
        %251 = vst [vmem:[%s114 + $0x17] sm:$0x1] %v249
        %s252 = sadd.s32 %s116, 8
        %s253 = smul.u32 %s252, 2
        %s254 = sld [smem:[#allocation3 + %s253]]
        %s255 = sadd.s32 %s253, 1
        %s256 = sld [smem:[#allocation3 + %s255]]
        %s257 = scalar_lea.vmem [#allocation4], %s254
        %v258 = vld [vmem:[%s257] sm:$0x1]
        %v259 = vld [vmem:[%s257 + $0x10] sm:$0x1]
        %s260 = scalar_lea.vmem [#allocation4], %s256
        %v261 = vld [vmem:[%s260] sm:$0x1]
        %v262 = vld [vmem:[%s260 + $0x10] sm:$0x1]
        %v263 = vadd.f32 %v258, %v261
        %v264 = vadd.f32 %v259, %v262
        %v265 = vmul.f32 %v263, 0.5
        %v266 = vmul.f32 %v264, 0.5
        %267 = vst [vmem:[%s114 + $0x8] sm:$0x1] %v265
        %268 = vst [vmem:[%s114 + $0x18] sm:$0x1] %v266
        %s269 = sadd.s32 %s116, 9
        %s270 = smul.u32 %s269, 2
        %s271 = sld [smem:[#allocation3 + %s270]]
        %s272 = sadd.s32 %s270, 1
        %s273 = sld [smem:[#allocation3 + %s272]]
        %s274 = scalar_lea.vmem [#allocation4], %s271
        %v275 = vld [vmem:[%s274] sm:$0x1]
        %v276 = vld [vmem:[%s274 + $0x10] sm:$0x1]
        %s277 = scalar_lea.vmem [#allocation4], %s273
        %v278 = vld [vmem:[%s277] sm:$0x1]
        %v279 = vld [vmem:[%s277 + $0x10] sm:$0x1]
        %v280 = vadd.f32 %v275, %v278
        %v281 = vadd.f32 %v276, %v279
        %v282 = vmul.f32 %v280, 0.5
        %v283 = vmul.f32 %v281, 0.5
        %284 = vst [vmem:[%s114 + $0x9] sm:$0x1] %v282
        %285 = vst [vmem:[%s114 + $0x19] sm:$0x1] %v283
        %s286 = sadd.s32 %s116, 10
        %s287 = smul.u32 %s286, 2
        %s288 = sld [smem:[#allocation3 + %s287]]
        %s289 = sadd.s32 %s287, 1
        %s290 = sld [smem:[#allocation3 + %s289]]
        %s291 = scalar_lea.vmem [#allocation4], %s288
        %v292 = vld [vmem:[%s291] sm:$0x1]
        %v293 = vld [vmem:[%s291 + $0x10] sm:$0x1]
        %s294 = scalar_lea.vmem [#allocation4], %s290
        %v295 = vld [vmem:[%s294] sm:$0x1]
        %v296 = vld [vmem:[%s294 + $0x10] sm:$0x1]
        %v297 = vadd.f32 %v292, %v295
        %v298 = vadd.f32 %v293, %v296
        %v299 = vmul.f32 %v297, 0.5
        %v300 = vmul.f32 %v298, 0.5
        %301 = vst [vmem:[%s114 + $0xa] sm:$0x1] %v299
        %302 = vst [vmem:[%s114 + $0x1a] sm:$0x1] %v300
        %s303 = sadd.s32 %s116, 11
        %s304 = smul.u32 %s303, 2
        %s305 = sld [smem:[#allocation3 + %s304]]
        %s306 = sadd.s32 %s304, 1
        %s307 = sld [smem:[#allocation3 + %s306]]
        %s308 = scalar_lea.vmem [#allocation4], %s305
        %v309 = vld [vmem:[%s308] sm:$0x1]
        %v310 = vld [vmem:[%s308 + $0x10] sm:$0x1]
        %s311 = scalar_lea.vmem [#allocation4], %s307
        %v312 = vld [vmem:[%s311] sm:$0x1]
        %v313 = vld [vmem:[%s311 + $0x10] sm:$0x1]
        %v314 = vadd.f32 %v309, %v312
        %v315 = vadd.f32 %v310, %v313
        %v316 = vmul.f32 %v314, 0.5
        %v317 = vmul.f32 %v315, 0.5
        %318 = vst [vmem:[%s114 + $0xb] sm:$0x1] %v316
        %319 = vst [vmem:[%s114 + $0x1b] sm:$0x1] %v317
        %s320 = sadd.s32 %s116, 12
        %s321 = smul.u32 %s320, 2
        %s322 = sld [smem:[#allocation3 + %s321]]
        %s323 = sadd.s32 %s321, 1
        %s324 = sld [smem:[#allocation3 + %s323]]
        %s325 = scalar_lea.vmem [#allocation4], %s322
        %v326 = vld [vmem:[%s325] sm:$0x1]
        %v327 = vld [vmem:[%s325 + $0x10] sm:$0x1]
        %s328 = scalar_lea.vmem [#allocation4], %s324
        %v329 = vld [vmem:[%s328] sm:$0x1]
        %v330 = vld [vmem:[%s328 + $0x10] sm:$0x1]
        %v331 = vadd.f32 %v326, %v329
        %v332 = vadd.f32 %v327, %v330
        %v333 = vmul.f32 %v331, 0.5
        %v334 = vmul.f32 %v332, 0.5
        %335 = vst [vmem:[%s114 + $0xc] sm:$0x1] %v333
        %336 = vst [vmem:[%s114 + $0x1c] sm:$0x1] %v334
        %s337 = sadd.s32 %s116, 13
        %s338 = smul.u32 %s337, 2
        %s339 = sld [smem:[#allocation3 + %s338]]
        %s340 = sadd.s32 %s338, 1
        %s341 = sld [smem:[#allocation3 + %s340]]
        %s342 = scalar_lea.vmem [#allocation4], %s339
        %v343 = vld [vmem:[%s342] sm:$0x1]
        %v344 = vld [vmem:[%s342 + $0x10] sm:$0x1]
        %s345 = scalar_lea.vmem [#allocation4], %s341
        %v346 = vld [vmem:[%s345] sm:$0x1]
        %v347 = vld [vmem:[%s345 + $0x10] sm:$0x1]
        %v348 = vadd.f32 %v343, %v346
        %v349 = vadd.f32 %v344, %v347
        %v350 = vmul.f32 %v348, 0.5
        %v351 = vmul.f32 %v349, 0.5
        %352 = vst [vmem:[%s114 + $0xd] sm:$0x1] %v350
        %353 = vst [vmem:[%s114 + $0x1d] sm:$0x1] %v351
        %s354 = sadd.s32 %s116, 14
        %s355 = smul.u32 %s354, 2
        %s356 = sld [smem:[#allocation3 + %s355]]
        %s357 = sadd.s32 %s355, 1
        %s358 = sld [smem:[#allocation3 + %s357]]
        %s359 = scalar_lea.vmem [#allocation4], %s356
        %v360 = vld [vmem:[%s359] sm:$0x1]
        %v361 = vld [vmem:[%s359 + $0x10] sm:$0x1]
        %s362 = scalar_lea.vmem [#allocation4], %s358
        %v363 = vld [vmem:[%s362] sm:$0x1]
        %v364 = vld [vmem:[%s362 + $0x10] sm:$0x1]
        %v365 = vadd.f32 %v360, %v363
        %v366 = vadd.f32 %v361, %v364
        %v367 = vmul.f32 %v365, 0.5
        %v368 = vmul.f32 %v366, 0.5
        %369 = vst [vmem:[%s114 + $0xe] sm:$0x1] %v367
        %370 = vst [vmem:[%s114 + $0x1e] sm:$0x1] %v368
        %s371 = sadd.s32 %s116, 15
        %s372 = smul.u32 %s371, 2
        %s373 = sld [smem:[#allocation3 + %s372]]
        %s374 = sadd.s32 %s372, 1
        %s375 = sld [smem:[#allocation3 + %s374]]
        %s376 = scalar_lea.vmem [#allocation4], %s373
        %v377 = vld [vmem:[%s376] sm:$0x1]
        %v378 = vld [vmem:[%s376 + $0x10] sm:$0x1]
        %s379 = scalar_lea.vmem [#allocation4], %s375
        %v380 = vld [vmem:[%s379] sm:$0x1]
        %v381 = vld [vmem:[%s379 + $0x10] sm:$0x1]
        %v382 = vadd.f32 %v377, %v380
        %v383 = vadd.f32 %v378, %v381
        %v384 = vmul.f32 %v382, 0.5
        %v385 = vmul.f32 %v383, 0.5
        %386 = vst [vmem:[%s114 + $0xf] sm:$0x1] %v384
        %387 = vst [vmem:[%s114 + $0x1f] sm:$0x1] %v385
        %s388 = sand.u32 %s50, 1
        %s389 = scalar_lea.sflag [#allocation6], %s388
        %s390 = sand.u32 %s50, 1
        %s391 = smul.addr %s390, 32
        %s392 = scalar_lea.vmem [#allocation7], %s391
        // Predicated region
        $region29: #{tpu_custom_call.1} parent=23 // pred_check
          %p393 = pneg %p60
        $region30: #{tpu_custom_call.1} parent=23 // pred_check_branch
          %395 = sbr.rel (%p393) target = $region32
        $region31: #{tpu_custom_call.1} parent=23 // pred_region
          #allocation9 [shape = 'u32[6]{0}', space=smem, size = 0x18, scoped, tag = 'DMA stride descriptor']
          %s396 = smul.u32 2, %s21
          %s398 = ssub.s32 512, 512
          %399 = vsyncadd %s389, %s398
          %s400 = smul.addr %s396, 128
          %s401 = scalar_lea.hbm %s2, %s400
          %s403 = sshll.u32 1, 14
          %s404 = sxor.u32 4294967295, %s403
          %s407 = sshll.u32 7, 18
          %s408 = sxor.u32 4294967295, %s407
          %s409 = sand.u32 0, %s408
          %s411 = sor.u32 %s409, 0
          %s413 = sshll.u32 3, 24
          %s414 = sxor.u32 4294967295, %s413
          %s415 = sand.u32 %s411, %s414
          %s417 = sor.u32 %s415, 0
          %s418 = sshll.u32 %s392, 4
          %s419 = int_to_ptr.vmem [resolvable:$true] %s418
          %425 = sst [smem:[#allocation9]] 256
          %s426 = scalar_lea.smem [#allocation9], 1
          %427 = sst [smem:[%s426]] 512
          %s428 = scalar_lea.smem [#allocation9], 2
          %429 = sst [smem:[%s428]] 2
          %s430 = scalar_lea.smem [#allocation9], 3
          %431 = sst [smem:[%s430]] 128
          %s432 = scalar_lea.smem [#allocation9], 4
          %433 = sst [smem:[%s432]] 128
          %s434 = scalar_lea.smem [#allocation9], 5
          %435 = sst [smem:[%s434]] 8
          %437 = dma.general %s419, 512, %s401, %s389, [#allocation8], [#allocation9], %s417, 0
        $region32: #{tpu_custom_call.1} parent=23 // pred_fallthru
          _
      $region24: #{tpu_custom_call.1} parent=5 // pred_fallthru
        _
      %p438 = scmp.le.s32.totalorder 2, %s16
      // Predicated region
      $region33: #{tpu_custom_call.1} parent=5 // pred_check
        %p439 = pneg %p438
      $region34: #{tpu_custom_call.1} parent=5 // pred_check_branch
        %441 = sbr.rel (%p439) target = $region36
      $region35: #{tpu_custom_call.1} parent=5 // pred_region
        %s442 = ssub.s32 %s16, 2
        // Predicated region
        $region37: #{tpu_custom_call.1} parent=35 // pred_check
          %p443 = pneg %p66
        $region38: #{tpu_custom_call.1} parent=35 // pred_check_branch
          %445 = sbr.rel (%p443) target = $region40
        $region39: #{tpu_custom_call.1} parent=35 // pred_region
          %s446 = sand.u32 %s51, 1
          %s447 = scalar_lea.sflag [#allocation6], %s446
          %s448 = sand.u32 %s51, 1
          %s449 = smul.addr %s448, 32
          %s450 = scalar_lea.vmem [#allocation7], %s449
          %451 = dma.done %s447, 512
        $region40: #{tpu_custom_call.1} parent=35 // pred_fallthru
          _
      $region36: #{tpu_custom_call.1} parent=5 // pred_fallthru
        _
    $region6: #{tpu_custom_call.1} parent=1 // loop_footer
      %s20 = sadd.s32 1, %s16
    $region7: #{tpu_custom_call.1} parent=1 // loop_footer_branch
      %15 = sbr.rel target = $region3
    $region8: #{tpu_custom_call.1} parent=1 // loop_exit
      _
    %452 = vsyncpa [#allocation5], 1
    %s453 = scalar_lea.sflag [#allocation5], 1
    %454 = vsyncpa %s453, 1
    %455 = vsyncpa [#allocation6], 1
    %s456 = scalar_lea.sflag [#allocation6], 1
    %457 = vsyncpa %s456, 1

</llo_original>
